<compile_context>
chip_gen: v7x
topology: tpu7x:2x2x1
jax: 0.10.0
libtpu: 0.0.40
codegen_flags: <defaults>
</compile_context>

<pallas_src>
import jax
import jax.numpy as jnp
from jax.experimental import pallas as pl
from jax.experimental.pallas import tpu as pltpu


def exu_kernel(x_ref, w_ref, b_ref, o_ref, acc_ref, expw_ref):
    # Grid = (j: F_out tiles, i: batch tiles, k: F_in reduction tiles).
    i = pl.program_id(1)
    k = pl.program_id(2)
    nk = pl.num_programs(2)

    # Refresh the exp(W) cache for this (k, j) weight block only on the first
    # batch tile; subsequent batch tiles reuse the cached value (EUP hoist).
    @pl.when(i == 0)
    def _():
        expw_ref[k] = jnp.exp(w_ref[...].astype(jnp.float32)).astype(expw_ref.dtype)

    # Zero the f32 accumulator at the start of the reduction.
    @pl.when(k == 0)
    def _():
        acc_ref[...] = jnp.zeros_like(acc_ref)

    # Bias subtract in f32 on the VPU (v5e-safe); downcast only at the MXU input.
    xc = x_ref[...].astype(jnp.float32) - b_ref[...].astype(jnp.float32)  # (TM, TK)
    acc_ref[...] += jnp.dot(
        xc.astype(expw_ref.dtype), expw_ref[k],
        preferred_element_type=jnp.float32,
    )

    # Write the finished output tile once per (i, j).
    @pl.when(k == nk - 1)
    def _():
        o_ref[...] = acc_ref[...].astype(o_ref.dtype)


def _round_up(x, m):
    return (x + m - 1) // m * m


def exu_forward(x, weights, bias, *, tm=256, tn=256, tk=256,
                mxu_dtype=None, vmem_limit_bytes=48 * 1024 * 1024):
    """ExU forward: (x - bias) @ exp(weights).

    x: (B, F_in), weights: (F_in, F_out), bias: (F_in,) -> (B, F_out).

    mxu_dtype: dtype fed to the MXU (exp/subtract always done in f32,
    accumulation always f32). None -> use x.dtype. Pass jnp.bfloat16 on
    v6e/v7x for full-rate MXU when f32 matmul precision is not required.
    """
    B, F_in = x.shape
    F_in_w, F_out = weights.shape
    assert F_in == F_in_w and bias.shape == (F_in,)

    if mxu_dtype is None:
        mxu_dtype = x.dtype

    # Tile sizes: sublane multiple (8) on batch, lane-dense (128) on features.
    tm = min(_round_up(tm, 8), _round_up(B, 8))
    tk = min(_round_up(tk, 128), _round_up(F_in, 128))
    tn = min(_round_up(tn, 128), _round_up(F_out, 128))

    B_p = _round_up(B, tm)
    K_p = _round_up(F_in, tk)
    N_p = _round_up(F_out, tn)

    # Zero padding preserves semantics: padded rows of (x - b) are exactly 0,
    # so exp(0)=1 in padded W rows contributes nothing; padded output rows /
    # columns are sliced off below.
    x_p = jnp.pad(x, ((0, B_p - B), (0, K_p - F_in)))
    w_p = jnp.pad(weights, ((0, K_p - F_in), (0, N_p - F_out)))
    b_p = jnp.pad(bias, (0, K_p - F_in)).reshape(1, K_p)

    grid = (N_p // tn, B_p // tm, K_p // tk)  # (j, i, k); k = reduction, innermost

    out = pl.pallas_call(
        exu_kernel,
        out_shape=jax.ShapeDtypeStruct((B_p, N_p), x.dtype),
        grid_spec=pltpu.PrefetchScalarGridSpec(
            num_scalar_prefetch=0,
            grid=grid,
            in_specs=[
                pl.BlockSpec((tm, tk), lambda j, i, k: (i, k)),   # x tile
                pl.BlockSpec((tk, tn), lambda j, i, k: (k, j)),   # W tile
                pl.BlockSpec((1, tk), lambda j, i, k: (0, k)),    # bias tile
            ],
            out_specs=pl.BlockSpec((tm, tn), lambda j, i, k: (i, j)),
            scratch_shapes=[
                pltpu.VMEM((tm, tn), jnp.float32),                 # f32 accumulator
                pltpu.VMEM((K_p // tk, tk, tn), mxu_dtype),        # exp(W) cache
            ],
        ),
        compiler_params=pltpu.CompilerParams(
            # j (F_out tiles) parallel -> megacore sharding (2 TCs on v7x).
            # i must stay "arbitrary": the exp(W) cache requires i==0 first.
            dimension_semantics=("parallel", "arbitrary", "arbitrary"),
            vmem_limit_bytes=vmem_limit_bytes,
        ),
    )(x_p, w_p, b_p)

    return out[:B, :F_out]


def _trunc_normal(key, shape, mean=0.0, std=1.0, a=-2.0, b=2.0):
    # Mimics torch.nn.init.trunc_normal_ (absolute truncation bounds [a, b]).
    lo = (a - mean) / std
    hi = (b - mean) / std
    return jax.random.truncated_normal(key, lo, hi, shape, jnp.float32) * std + mean


if __name__ == "__main__":
    key = jax.random.PRNGKey(0)

    # Test 1: lane-dense shapes, multiple tiles on every grid axis
    # (2 F_out tiles x 2 batch tiles x 2 reduction tiles) to exercise the
    # accumulator and the cross-batch-tile exp(W) cache.
    B, F_in, F_out = 16, 256, 256
    kx, kw, kb, key = jax.random.split(key, 4)
    x = jax.random.normal(kx, (B, F_in), jnp.float32)
    weights = _trunc_normal(kw, (F_in, F_out), mean=4.0, std=0.5)
    bias = _trunc_normal(kb, (F_in,), mean=0.0, std=0.5)

    out = exu_forward(x, weights, bias, tm=8, tn=128, tk=128)
    jax.block_until_ready(out)
    ref = (x - bias) @ jnp.exp(weights)
    assert out.shape == (B, F_out)
    assert jnp.allclose(out, ref, rtol=1e-4, atol=1e-4), float(
        jnp.max(jnp.abs(out - ref)))

    # Test 2: ragged small shapes -> exercises the zero-padding path.
    B2, F_in2, F_out2 = 5, 32, 64
    kx2, kw2, kb2 = jax.random.split(key, 3)
    x2 = jax.random.normal(kx2, (B2, F_in2), jnp.float32)
    weights2 = _trunc_normal(kw2, (F_in2, F_out2), mean=4.0, std=0.5)
    bias2 = _trunc_normal(kb2, (F_in2,), mean=0.0, std=0.5)

    out2 = exu_forward(x2, weights2, bias2)
    jax.block_until_ready(out2)
    ref2 = (x2 - bias2) @ jnp.exp(weights2)
    assert out2.shape == (B2, F_out2)
    assert jnp.allclose(out2, ref2, rtol=1e-4, atol=1e-4), float(
        jnp.max(jnp.abs(out2 - ref2)))

    print("KERNEL_OK")
</pallas_src>

<mosaic_0001>
module attributes {stable_mosaic.version = 11 : i64} {
  func.func @exu_kernel(%arg0: i32, %arg1: i32, %arg2: i32, %arg3: memref<8x128xf32, #tpu.memory_space<vmem>>, %arg4: memref<128x128xf32, #tpu.memory_space<vmem>>, %arg5: memref<1x128xf32, #tpu.memory_space<vmem>>, %arg6: memref<8x128xf32, #tpu.memory_space<vmem>>, %arg7: memref<8x128xf32, #tpu.memory_space<vmem>>, %arg8: memref<2x128x128xf32, #tpu.memory_space<vmem>>) attributes {dimension_semantics = [#tpu.dimension_semantics<parallel>, #tpu.dimension_semantics<arbitrary>, #tpu.dimension_semantics<arbitrary>], iteration_bounds = array<i64: 2, 2, 2>, scalar_prefetch = 0 : i64, scratch_operands = 2 : i64, tpu.core_type = #tpu.core_type<tc>, window_params = [{transform_indices = @transform_0, window_bounds = array<i64: 8, 128>}, {transform_indices = @transform_1, window_bounds = array<i64: 128, 128>}, {transform_indices = @transform_2, window_bounds = array<i64: 1, 128>}, {transform_indices = @transform_3, window_bounds = array<i64: 8, 128>}]} {
    %c0_i32 = arith.constant 0 : i32
    %0 = arith.cmpi eq, %arg1, %c0_i32 : i32
    %1 = arith.extui %0 : i1 to i32
    %c0_i32_0 = arith.constant 0 : i32
    %2 = arith.cmpi ne, %1, %c0_i32_0 : i32
    scf.if %2 {
      %c0_13 = arith.constant 0 : index
      %c0_14 = arith.constant 0 : index
      %20 = vector.load %arg4[%c0_13, %c0_14] : memref<128x128xf32, #tpu.memory_space<vmem>>, vector<128x128xf32>
      %21 = math.exp %20 : vector<128x128xf32>
      %22 = arith.index_cast %arg2 : i32 to index
      %c0_15 = arith.constant 0 : index
      %c0_16 = arith.constant 0 : index
      %23 = vector.load %arg8[%22, %c0_15, %c0_16] : memref<2x128x128xf32, #tpu.memory_space<vmem>>, vector<1x128x128xf32>
      %24 = vector.shape_cast %23 : vector<1x128x128xf32> to vector<128x128xf32>
      %25 = vector.shape_cast %21 : vector<128x128xf32> to vector<1x128x128xf32>
      tpu.vector_store %arg8[%22, %c0_15, %c0_16], %25 {strides = array<i32>} : memref<2x128x128xf32, #tpu.memory_space<vmem>>, vector<1x128x128xf32>,
    } else {
    }
    %c0_i32_1 = arith.constant 0 : i32
    %3 = arith.cmpi eq, %arg2, %c0_i32_1 : i32
    %4 = arith.extui %3 : i1 to i32
    %c0_i32_2 = arith.constant 0 : i32
    %5 = arith.cmpi ne, %4, %c0_i32_2 : i32
    scf.if %5 {
      %cst_13 = arith.constant 0.000000e+00 : f32
      %20 = vector.broadcast %cst_13 : f32 to vector<8x128xf32>
      %c0_14 = arith.constant 0 : index
      %c0_15 = arith.constant 0 : index
      %21 = vector.load %arg7[%c0_14, %c0_15] : memref<8x128xf32, #tpu.memory_space<vmem>>, vector<8x128xf32>
      tpu.vector_store %arg7[%c0_14, %c0_15], %20 {strides = array<i32>} : memref<8x128xf32, #tpu.memory_space<vmem>>, vector<8x128xf32>,
    } else {
    }
    %c0 = arith.constant 0 : index
    %c0_3 = arith.constant 0 : index
    %6 = vector.load %arg3[%c0, %c0_3] : memref<8x128xf32, #tpu.memory_space<vmem>>, vector<8x128xf32>
    %c0_4 = arith.constant 0 : index
    %c0_5 = arith.constant 0 : index
    %7 = vector.load %arg5[%c0_4, %c0_5] : memref<1x128xf32, #tpu.memory_space<vmem>>, vector<1x128xf32>
    %8 = vector.broadcast %7 : vector<1x128xf32> to vector<8x128xf32>
    %9 = arith.subf %6, %8 : vector<8x128xf32>
    %c0_6 = arith.constant 0 : index
    %c0_7 = arith.constant 0 : index
    %10 = vector.load %arg7[%c0_6, %c0_7] : memref<8x128xf32, #tpu.memory_space<vmem>>, vector<8x128xf32>
    %11 = arith.index_cast %arg2 : i32 to index
    %c0_8 = arith.constant 0 : index
    %c0_9 = arith.constant 0 : index
    %12 = vector.load %arg8[%11, %c0_8, %c0_9] : memref<2x128x128xf32, #tpu.memory_space<vmem>>, vector<1x128x128xf32>
    %13 = vector.shape_cast %12 : vector<1x128x128xf32> to vector<128x128xf32>
    %cst = arith.constant dense<0.000000e+00> : vector<8x128xf32>
    %14 = tpu.matmul %9, %13, %cst {dimension_numbers = #tpu.dot_dimension_numbers<[1], [0], [0], [1], [0, 0, 1, 1], [], []>} : vector<8x128xf32>, vector<128x128xf32>, vector<8x128xf32> -> vector<8x128xf32>
    %15 = arith.addf %10, %14 : vector<8x128xf32>
    %c0_10 = arith.constant 0 : index
    %c0_11 = arith.constant 0 : index
    %16 = vector.load %arg7[%c0_10, %c0_11] : memref<8x128xf32, #tpu.memory_space<vmem>>, vector<8x128xf32>
    tpu.vector_store %arg7[%c0_10, %c0_11], %15 {strides = array<i32>} : memref<8x128xf32, #tpu.memory_space<vmem>>, vector<8x128xf32>,
    %c1_i32 = arith.constant 1 : i32
    %17 = arith.cmpi eq, %arg2, %c1_i32 : i32
    %18 = arith.extui %17 : i1 to i32
    %c0_i32_12 = arith.constant 0 : i32
    %19 = arith.cmpi ne, %18, %c0_i32_12 : i32
    scf.if %19 {
      %c0_13 = arith.constant 0 : index
      %c0_14 = arith.constant 0 : index
      %20 = vector.load %arg7[%c0_13, %c0_14] : memref<8x128xf32, #tpu.memory_space<vmem>>, vector<8x128xf32>
      %c0_15 = arith.constant 0 : index
      %c0_16 = arith.constant 0 : index
      %21 = vector.load %arg6[%c0_15, %c0_16] : memref<8x128xf32, #tpu.memory_space<vmem>>, vector<8x128xf32>
      tpu.vector_store %arg6[%c0_15, %c0_16], %20 {strides = array<i32>} : memref<8x128xf32, #tpu.memory_space<vmem>>, vector<8x128xf32>,
    } else {
    }
    return
  }
  func.func @transform_0(%arg0: i32, %arg1: i32, %arg2: i32) -> (i32, i32) {
    %c0_i32 = arith.constant 0 : i32
    return %arg1, %arg2 : i32, i32
  }
  func.func @transform_1(%arg0: i32, %arg1: i32, %arg2: i32) -> (i32, i32) {
    %c0_i32 = arith.constant 0 : i32
    return %arg2, %arg0 : i32, i32
  }
  func.func @transform_2(%arg0: i32, %arg1: i32, %arg2: i32) -> (i32, i32) {
    %c0_i32 = arith.constant 0 : i32
    %c0_i32_0 = arith.constant 0 : i32
    return %c0_i32, %arg2 : i32, i32
  }
  func.func @transform_3(%arg0: i32, %arg1: i32, %arg2: i32) -> (i32, i32) {
    %c0_i32 = arith.constant 0 : i32
    return %arg1, %arg0 : i32, i32
  }
}

</mosaic_0001>

<llo_original>
// kernel: tpu_custom_call.1
$region0: #{tpu_custom_call.1}
  #allocation0 [shape = 'u32[]', space=smem, size = 0x4, offset = 0x4, fixed_abs, tag = 'smem constant byte address 0x4 - core index']
  #allocation1 [shape = 'u32[144,128]{1,0:T(1,128)}', space=vmem, size = 0x12000, scoped, tag = 'internal scratch']
  #allocation2 [shape = 'f32[8,128]{1,0:T(8,128)}', space=vmem, size = 0x1000, scoped, tag = 'scratch operand']
  #allocation3 [shape = 'f32[2,128,128]{2,1,0:T(8,128)}', space=vmem, size = 0x20000, scoped, tag = 'scratch operand']
  %s0 = inlined_call_operand.hbm [shape: f32[16,256], index: 0, kind: input, shape index: {}]
  %s1 = inlined_call_operand.hbm [shape: f32[256,256], index: 1, kind: input, shape index: {}]
  %s2 = inlined_call_operand.vmem [shape: f32[1,256], index: 2, kind: input, shape index: {}]
  %s3 = inlined_call_operand.hbm [shape: f32[16,256], index: 3, kind: output, shape index: {}]
  %s4 = sld [smem:[#allocation0]]
  $region65: #{tpu_custom_call.1} parent=0
    _
  %s6 = ssub.s32 1, %s4
  %s7 = scalar_select 0, %s6, %s4
  $region1: #{tpu_custom_call.1} parent=0
    #allocation4 [shape = 'u8[8192]{0}', space=vmem, size = 0x2000, scoped, tag = 'input window, operand 0']
    #allocation5 [shape = 's32[2]{0}', space=sflag, size = 0x8, scoped, tag = 'scoped memory for tpu_custom_call.1']
    #allocation6 [shape = 's32[2]{0}', space=sflag, size = 0x8, scoped, tag = 'scoped memory for tpu_custom_call.1']
    #allocation7 [shape = 'u8[131072]{0}', space=vmem, size = 0x20000, scoped, tag = 'input window, operand 1']
    #allocation8 [shape = 's32[2]{0}', space=sflag, size = 0x8, scoped, tag = 'scoped memory for tpu_custom_call.1']
    #allocation9 [shape = 'u8[8192]{0}', space=vmem, size = 0x2000, scoped, tag = 'output window, operand 0']
    %8 = vsyncpa [#allocation5], 0
    %s9 = scalar_lea.sflag [#allocation5], 1
    %10 = vsyncpa %s9, 0
    %11 = vsyncpa [#allocation8], 0
    %s12 = scalar_lea.sflag [#allocation8], 1
    %13 = vsyncpa %s12, 0
    %14 = vsyncpa [#allocation6], 0
    %s15 = scalar_lea.sflag [#allocation6], 1
    %16 = vsyncpa %s15, 0
    loop: start=0, step=1, limit=10
    $region2: #{tpu_custom_call.1} parent=1 // loop_pre_header
      _
    $region3: #{tpu_custom_call.1} parent=1 // loop_header
      %s18 = sphi 0, %s22
      %p19 = scmp.ge.s32.totalorder %s18, 10
      %s25 = sphi 0, %s44
      %s26 = sphi 0, %s40
      %s27 = sphi 0, %s36
      %s28 = sphi 0, %s25
      %s29 = sphi 0, %s26
      %s30 = sphi 0, %s27
      %s31 = sphi 0, %s28
      %s32 = sphi 0, %s29
      %s33 = sphi 0, %s30
      %s49 = sphi 0, %s51
      %s52 = sphi 0, %s49
      %s53 = sphi 0, %s52
      %s69 = sphi 0, %s53
      %s77 = sphi 0, %s79
      %s80 = sphi 0, %s77
      %s81 = sphi 0, %s80
      %s97 = sphi 0, %s81
      %s103 = sphi 0, %s105
      %s106 = sphi 0, %s103
      %s107 = sphi 0, %s106
      %s123 = sphi 0, %s107
      %s131 = sphi 0, %s133
      %s134 = sphi 0, %s131
      %s135 = sphi 0, %s134
      %s151 = sphi 0, %s135
    $region4: #{tpu_custom_call.1} parent=1 // loop_header_branch
      %21 = sbr.rel (%p19) target = $region8
    $region5: #{tpu_custom_call.1} parent=1 // loop_body
      %s23 = ssub.s32 %s18, 1
      %s24 = ssub.s32 %s18, 2
      %s34 = sadd.s32 1, %s27
      %p35 = scmp.ge.s32.totalorder %s34, 2
      %s36 = scalar_select %p35, 0, %s34
      %s37 = sadd.s32 1, %s26
      %s38 = scalar_select %p35, %s37, %s26
      %p39 = scmp.ge.s32.totalorder %s38, 2
      %s40 = scalar_select %p39, 0, %s38
      %s41 = sadd.s32 1, %s25
      %s42 = scalar_select %p39, %s41, %s25
      %p43 = scmp.ge.s32.totalorder %s42, 2
      %s44 = scalar_select %p43, 0, %s42
      %s45 = ssub.s32 %s26, %s40
      %s46 = ssub.s32 %s27, %s36
      %s47 = sor.u32 %s45, %s46
      %p48 = scmp.eq.s32.totalorder %s47, 0
      %s50 = sadd.s32 %s49, 1
      %s51 = scalar_select %p48, %s49, %s50
      %p54 = pneg %p48
      %p55 = scmp.eq.s32.totalorder %s18, 7
      %p56 = por %p54, %p55
      %p57 = scmp.ne.s32.totalorder %s49, %s52
      %p58 = scmp.eq.s32.totalorder %s18, 0
      %p59 = por %p57, %p58
      %p60 = scmp.ne.s32.totalorder %s49, %s52
      %p61 = scmp.eq.s32.totalorder %s23, 7
      %p62 = por %p60, %p61
      %p63 = scmp.ne.s32.totalorder %s52, %s53
      %p64 = scmp.eq.s32.totalorder %s23, 0
      %p65 = por %p63, %p64
      %p66 = scmp.ne.s32.totalorder %s52, %s53
      %p67 = scmp.eq.s32.totalorder %s24, 7
      %p68 = por %p66, %p67
      %p70 = scmp.ne.s32.totalorder %s53, %s69
      %p71 = scmp.eq.s32.totalorder %s24, 0
      %p72 = por %p70, %p71
      %s73 = ssub.s32 %s27, %s36
      %s74 = ssub.s32 %s25, %s44
      %s75 = sor.u32 %s73, %s74
      %p76 = scmp.eq.s32.totalorder %s75, 0
      %s78 = sadd.s32 %s77, 1
      %s79 = scalar_select %p76, %s77, %s78
      %p82 = pneg %p76
      %p83 = scmp.eq.s32.totalorder %s18, 7
      %p84 = por %p82, %p83
      %p85 = scmp.ne.s32.totalorder %s77, %s80
      %p86 = scmp.eq.s32.totalorder %s18, 0
      %p87 = por %p85, %p86
      %p88 = scmp.ne.s32.totalorder %s77, %s80
      %p89 = scmp.eq.s32.totalorder %s23, 7
      %p90 = por %p88, %p89
      %p91 = scmp.ne.s32.totalorder %s80, %s81
      %p92 = scmp.eq.s32.totalorder %s23, 0
      %p93 = por %p91, %p92
      %p94 = scmp.ne.s32.totalorder %s80, %s81
      %p95 = scmp.eq.s32.totalorder %s24, 7
      %p96 = por %p94, %p95
      %p98 = scmp.ne.s32.totalorder %s81, %s97
      %p99 = scmp.eq.s32.totalorder %s24, 0
      %p100 = por %p98, %p99
      %s101 = ssub.s32 %s27, %s36
      %p102 = scmp.eq.s32.totalorder %s101, 0
      %s104 = sadd.s32 %s103, 1
      %s105 = scalar_select %p102, %s103, %s104
      %p108 = pneg %p102
      %p109 = scmp.eq.s32.totalorder %s18, 7
      %p110 = por %p108, %p109
      %p111 = scmp.ne.s32.totalorder %s103, %s106
      %p112 = scmp.eq.s32.totalorder %s18, 0
      %p113 = por %p111, %p112
      %p114 = scmp.ne.s32.totalorder %s103, %s106
      %p115 = scmp.eq.s32.totalorder %s23, 7
      %p116 = por %p114, %p115
      %p117 = scmp.ne.s32.totalorder %s106, %s107
      %p118 = scmp.eq.s32.totalorder %s23, 0
      %p119 = por %p117, %p118
      %p120 = scmp.ne.s32.totalorder %s106, %s107
      %p121 = scmp.eq.s32.totalorder %s24, 7
      %p122 = por %p120, %p121
      %p124 = scmp.ne.s32.totalorder %s107, %s123
      %p125 = scmp.eq.s32.totalorder %s24, 0
      %p126 = por %p124, %p125
      %s127 = ssub.s32 %s26, %s40
      %s128 = ssub.s32 %s25, %s44
      %s129 = sor.u32 %s127, %s128
      %p130 = scmp.eq.s32.totalorder %s129, 0
      %s132 = sadd.s32 %s131, 1
      %s133 = scalar_select %p130, %s131, %s132
      %p136 = pneg %p130
      %p137 = scmp.eq.s32.totalorder %s18, 7
      %p138 = por %p136, %p137
      %p139 = scmp.ne.s32.totalorder %s131, %s134
      %p140 = scmp.eq.s32.totalorder %s18, 0
      %p141 = por %p139, %p140
      %p142 = scmp.ne.s32.totalorder %s131, %s134
      %p143 = scmp.eq.s32.totalorder %s23, 7
      %p144 = por %p142, %p143
      %p145 = scmp.ne.s32.totalorder %s134, %s135
      %p146 = scmp.eq.s32.totalorder %s23, 0
      %p147 = por %p145, %p146
      %p148 = scmp.ne.s32.totalorder %s134, %s135
      %p149 = scmp.eq.s32.totalorder %s24, 7
      %p150 = por %p148, %p149
      %p152 = scmp.ne.s32.totalorder %s135, %s151
      %p153 = scmp.eq.s32.totalorder %s24, 0
      %p154 = por %p152, %p153
      %p155 = scmp.le.s32.totalorder 1, %s18
      %p156 = scmp.lt.s32.totalorder %s18, 9
      %p157 = pnand %p155, %p156
      %p158 = pneg %p157
      // Predicated region
      $region9: #{tpu_custom_call.1} parent=5 // pred_check
        _
      $region10: #{tpu_custom_call.1} parent=5 // pred_check_branch
        %160 = sbr.rel (%p157) target = $region12
      $region11: #{tpu_custom_call.1} parent=5 // pred_region
        %s161 = ssub.s32 %s18, 1
      $region12: #{tpu_custom_call.1} parent=5 // pred_fallthru
        _
      %p162 = scmp.lt.s32.totalorder %s18, 8
      // Predicated region
      $region13: #{tpu_custom_call.1} parent=5 // pred_check
        %p163 = pneg %p162
      $region14: #{tpu_custom_call.1} parent=5 // pred_check_branch
        %165 = sbr.rel (%p163) target = $region16
      $region15: #{tpu_custom_call.1} parent=5 // pred_region
        // Predicated region
        $region17: #{tpu_custom_call.1} parent=15 // pred_check
          %p166 = pneg %p59
        $region18: #{tpu_custom_call.1} parent=15 // pred_check_branch
          %168 = sbr.rel (%p166) target = $region20
        $region19: #{tpu_custom_call.1} parent=15 // pred_region
          %s169 = sand.u32 %s49, 1
          %s170 = scalar_lea.sflag [#allocation5], %s169
          %s171 = sand.u32 %s49, 1
          %s172 = smul.addr %s171, 8
          %s173 = scalar_lea.vmem [#allocation4], %s172
          %s175 = ssub.s32 128, 128
          %176 = vsyncadd %s170, %s175
          %s177 = smul.addr %s26, 2
          %s178 = sadd.s32 %s27, %s177
          %s179 = smul.addr %s178, 128
          %s180 = scalar_lea.hbm %s0, %s179
          %s182 = sshll.u32 %s173, 4
          %s183 = int_to_ptr.vmem [resolvable:$true] %s182
          %185 = dma.hbm_to_vmem [thread:$0]  %s180, 128, %s183, %s170
        $region20: #{tpu_custom_call.1} parent=15 // pred_fallthru
          _
        // Predicated region
        $region21: #{tpu_custom_call.1} parent=15 // pred_check
          %p186 = pneg %p87
        $region22: #{tpu_custom_call.1} parent=15 // pred_check_branch
          %188 = sbr.rel (%p186) target = $region24
        $region23: #{tpu_custom_call.1} parent=15 // pred_region
          %s189 = sand.u32 %s77, 1
          %s190 = scalar_lea.sflag [#allocation8], %s189
          %s191 = sand.u32 %s77, 1
          %s192 = smul.addr %s191, 128
          %s193 = scalar_lea.vmem [#allocation7], %s192
          %s194 = smul.u32 16, %s27
          %s196 = ssub.s32 2048, 2048
          %197 = vsyncadd %s190, %s196
          %s198 = smul.addr %s194, 2
          %s199 = sadd.s32 %s25, %s198
          %s200 = smul.addr %s199, 128
          %s201 = scalar_lea.hbm %s1, %s200
          %s202 = sshll.u32 %s193, 4
          %s203 = int_to_ptr.vmem [resolvable:$true] %s202
          %208 = dma.hbm_to_vmem [thread:$0]  %s201, 2048, %s203, %s190, 256, 128, 8
        $region24: #{tpu_custom_call.1} parent=15 // pred_fallthru
          _
        // Predicated region
        $region25: #{tpu_custom_call.1} parent=15 // pred_check
          %p209 = pneg %p113
        $region26: #{tpu_custom_call.1} parent=15 // pred_check_branch
          %211 = sbr.rel (%p209) target = $region28
        $region27: #{tpu_custom_call.1} parent=15 // pred_region
          %p212 = scmp.lt.s32.totalorder %s27, 1
          %s213 = scalar_select %p212, %s27, 1
          %s214 = scalar_lea.vmem %s2, %s213
        $region28: #{tpu_custom_call.1} parent=15 // pred_fallthru
          _
      $region16: #{tpu_custom_call.1} parent=5 // pred_fallthru
        _
      %p215 = scmp.le.s32.totalorder 1, %s18
      %p216 = scmp.lt.s32.totalorder %s18, 9
      %p217 = pnand %p215, %p216
      %p218 = pneg %p217
      // Predicated region
      $region29: #{tpu_custom_call.1} parent=5 // pred_check
        _
      $region30: #{tpu_custom_call.1} parent=5 // pred_check_branch
        %220 = sbr.rel (%p217) target = $region32
      $region31: #{tpu_custom_call.1} parent=5 // pred_region
        %s221 = ssub.s32 %s18, 1
        %s222 = sand.u32 %s52, 1
        %s223 = scalar_lea.sflag [#allocation5], %s222
        %s224 = sand.u32 %s52, 1
        %s225 = smul.addr %s224, 8
        %s226 = scalar_lea.vmem [#allocation4], %s225
        // Predicated region
        $region33: #{tpu_custom_call.1} parent=31 // pred_check
          %p227 = pneg %p65
        $region34: #{tpu_custom_call.1} parent=31 // pred_check_branch
          %229 = sbr.rel (%p227) target = $region36
        $region35: #{tpu_custom_call.1} parent=31 // pred_region
          %230 = dma.done %s223, 128
        $region36: #{tpu_custom_call.1} parent=31 // pred_fallthru
          _
        %s231 = sand.u32 %s80, 1
        %s232 = scalar_lea.sflag [#allocation8], %s231
        %s233 = sand.u32 %s80, 1
        %s234 = smul.addr %s233, 128
        %s235 = scalar_lea.vmem [#allocation7], %s234
        // Predicated region
        $region37: #{tpu_custom_call.1} parent=31 // pred_check
          %p236 = pneg %p93
        $region38: #{tpu_custom_call.1} parent=31 // pred_check_branch
          %238 = sbr.rel (%p236) target = $region40
        $region39: #{tpu_custom_call.1} parent=31 // pred_region
          %239 = dma.done %s232, 2048
        $region40: #{tpu_custom_call.1} parent=31 // pred_fallthru
          _
        %s240 = sand.u32 %s52, 1
        %s241 = scalar_lea.sflag [#allocation5], %s240
        %s242 = sand.u32 %s52, 1
        %s243 = smul.addr %s242, 8
        %s244 = scalar_lea.vmem [#allocation4], %s243
        %p245 = pneg %p65
        %p246 = pneg %p62
        %s247 = sand.u32 %s80, 1
        %s248 = scalar_lea.sflag [#allocation8], %s247
        %s249 = sand.u32 %s80, 1
        %s250 = smul.addr %s249, 128
        %s251 = scalar_lea.vmem [#allocation7], %s250
        %p252 = pneg %p93
        %p253 = pneg %p90
        %p254 = scmp.lt.s32.totalorder %s30, 1
        %s255 = scalar_select %p254, %s30, 1
        %s256 = scalar_lea.vmem %s2, %s255
        %p257 = pneg %p119
        %p258 = pneg %p116
        %p259 = pneg %p147
        %p260 = pneg %p144
        %s261 = sand.u32 %s134, 1
        %s262 = scalar_lea.sflag [#allocation6], %s261
        %s263 = sand.u32 %s134, 1
        %s264 = smul.addr %s263, 8
        %s265 = scalar_lea.vmem [#allocation9], %s264
        %s266 = smul.u32 16, %s30
        %p267 = scmp.lt.s32.totalorder %s30, 1
        %s268 = scalar_select %p267, %s30, 1
        %s269 = scalar_lea.vmem %s2, %s268
        %p270 = scmp.eq.s32.totalorder %s29, 0
        // Predicated region
        $region41: #{tpu_custom_call.1} parent=31 // pred_check
          %p271 = pneg %p270
        $region42: #{tpu_custom_call.1} parent=31 // pred_check_branch
          %273 = sbr.rel (%p271) target = $region44
        $region43: #{tpu_custom_call.1} parent=31 // pred_region
          %v274 = vld [vmem:[%s235] sm:$0xff]
          %v275 = vld [vmem:[%s235 + $0x8] sm:$0xff]
          %v276 = vld [vmem:[%s235 + $0x10] sm:$0xff]
          %v277 = vld [vmem:[%s235 + $0x18] sm:$0xff]
          %v278 = vld [vmem:[%s235 + $0x20] sm:$0xff]
          %v279 = vld [vmem:[%s235 + $0x28] sm:$0xff]
          %v280 = vld [vmem:[%s235 + $0x30] sm:$0xff]
          %v281 = vld [vmem:[%s235 + $0x38] sm:$0xff]
          %v282 = vld [vmem:[%s235 + $0x40] sm:$0xff]
          %v283 = vld [vmem:[%s235 + $0x48] sm:$0xff]
          %v284 = vld [vmem:[%s235 + $0x50] sm:$0xff]
          %v285 = vld [vmem:[%s235 + $0x58] sm:$0xff]
          %v286 = vld [vmem:[%s235 + $0x60] sm:$0xff]
          %v287 = vld [vmem:[%s235 + $0x68] sm:$0xff]
          %v288 = vld [vmem:[%s235 + $0x70] sm:$0xff]
          %v289 = vld [vmem:[%s235 + $0x78] sm:$0xff]
          %v290 = vmul.f32 %v274, 1.442695
          %v291 = vpow.pop %v290
          %v292 = vmul.f32 %v275, 1.442695
          %v293 = vpow.pop %v292
          %v294 = vmul.f32 %v276, 1.442695
          %v295 = vpow.pop %v294
          %v296 = vmul.f32 %v277, 1.442695
          %v297 = vpow.pop %v296
          %v298 = vmul.f32 %v278, 1.442695
          %v299 = vpow.pop %v298
          %v300 = vmul.f32 %v279, 1.442695
          %v301 = vpow.pop %v300
          %v302 = vmul.f32 %v280, 1.442695
          %v303 = vpow.pop %v302
          %v304 = vmul.f32 %v281, 1.442695
          %v305 = vpow.pop %v304
          %v306 = vmul.f32 %v282, 1.442695
          %v307 = vpow.pop %v306
          %v308 = vmul.f32 %v283, 1.442695
          %v309 = vpow.pop %v308
          %v310 = vmul.f32 %v284, 1.442695
          %v311 = vpow.pop %v310
          %v312 = vmul.f32 %v285, 1.442695
          %v313 = vpow.pop %v312
          %v314 = vmul.f32 %v286, 1.442695
          %v315 = vpow.pop %v314
          %v316 = vmul.f32 %v287, 1.442695
          %v317 = vpow.pop %v316
          %v318 = vmul.f32 %v288, 1.442695
          %v319 = vpow.pop %v318
          %v320 = vmul.f32 %v289, 1.442695
          %v321 = vpow.pop %v320
          %s322 = smul.u32 %s30, 128
          %s323 = scalar_lea.vmem [#allocation3], %s322
          %324 = vst [vmem:[%s323] sm:$0xff] %v291
          %325 = vst [vmem:[%s323 + $0x8] sm:$0xff] %v293
          %326 = vst [vmem:[%s323 + $0x10] sm:$0xff] %v295
          %327 = vst [vmem:[%s323 + $0x18] sm:$0xff] %v297
          %328 = vst [vmem:[%s323 + $0x20] sm:$0xff] %v299
          %329 = vst [vmem:[%s323 + $0x28] sm:$0xff] %v301
          %330 = vst [vmem:[%s323 + $0x30] sm:$0xff] %v303
          %331 = vst [vmem:[%s323 + $0x38] sm:$0xff] %v305
          %332 = vst [vmem:[%s323 + $0x40] sm:$0xff] %v307
          %333 = vst [vmem:[%s323 + $0x48] sm:$0xff] %v309
          %334 = vst [vmem:[%s323 + $0x50] sm:$0xff] %v311
          %335 = vst [vmem:[%s323 + $0x58] sm:$0xff] %v313
          %336 = vst [vmem:[%s323 + $0x60] sm:$0xff] %v315
          %337 = vst [vmem:[%s323 + $0x68] sm:$0xff] %v317
          %338 = vst [vmem:[%s323 + $0x70] sm:$0xff] %v319
          %339 = vst [vmem:[%s323 + $0x78] sm:$0xff] %v321
        $region44: #{tpu_custom_call.1} parent=31 // pred_fallthru
          _
        %p340 = scmp.eq.s32.totalorder %s30, 0
        // Predicated region
        $region45: #{tpu_custom_call.1} parent=31 // pred_check
          %p341 = pneg %p340
        $region46: #{tpu_custom_call.1} parent=31 // pred_check_branch
          %343 = sbr.rel (%p341) target = $region48
        $region47: #{tpu_custom_call.1} parent=31 // pred_region
          %344 = vst [vmem:[#allocation2] sm:$0xff] 0.0
        $region48: #{tpu_custom_call.1} parent=31 // pred_fallthru
          _
        %v345 = vld [vmem:[%s226] sm:$0xff]
        %v346 = vld [vmem:[%s269] sm:$0x1]
        %v348 = vlaneseq
        %v349 = vshrl.u32 %v348, 7
        %v350 = vsub.s32 0, %v349
        %v351 = vrot.slane %v346, %v350
        %v353 = vsub.f32 %v345, %v351
        %v354 = vld [vmem:[#allocation2] sm:$0xff]
        %s355 = smul.u32 %s30, 128
        %s356 = scalar_lea.vmem [#allocation3], %s355
        %v357 = vld [vmem:[%s356] sm:$0xff]
        %v358 = vld [vmem:[%s356 + $0x8] sm:$0xff]
        %v359 = vld [vmem:[%s356 + $0x10] sm:$0xff]
        %v360 = vld [vmem:[%s356 + $0x18] sm:$0xff]
        %v361 = vld [vmem:[%s356 + $0x20] sm:$0xff]
        %v362 = vld [vmem:[%s356 + $0x28] sm:$0xff]
        %v363 = vld [vmem:[%s356 + $0x30] sm:$0xff]
        %v364 = vld [vmem:[%s356 + $0x38] sm:$0xff]
        %v365 = vld [vmem:[%s356 + $0x40] sm:$0xff]
        %v366 = vld [vmem:[%s356 + $0x48] sm:$0xff]
        %v367 = vld [vmem:[%s356 + $0x50] sm:$0xff]
        %v368 = vld [vmem:[%s356 + $0x58] sm:$0xff]
        %v369 = vld [vmem:[%s356 + $0x60] sm:$0xff]
        %v370 = vld [vmem:[%s356 + $0x68] sm:$0xff]
        %v371 = vld [vmem:[%s356 + $0x70] sm:$0xff]
        %v372 = vld [vmem:[%s356 + $0x78] sm:$0xff]
        %373 = vmatprep.subr.mxu0 0.0
        %374 = vmatpush1.msra.mxu0 %v357
        %375 = vmatprep.subr.mxu0 0.0
        %376 = vmatpush1.msra.mxu0 %v358
        %377 = vmatprep.subr.mxu0 0.0
        %378 = vmatpush1.msra.mxu0 %v359
        %379 = vmatprep.subr.mxu0 0.0
        %380 = vmatpush1.msra.mxu0 %v360
        %381 = vmatprep.subr.mxu0 0.0
        %382 = vmatpush1.msra.mxu0 %v361
        %383 = vmatprep.subr.mxu0 0.0
        %384 = vmatpush1.msra.mxu0 %v362
        %385 = vmatprep.subr.mxu0 0.0
        %386 = vmatpush1.msra.mxu0 %v363
        %387 = vmatprep.subr.mxu0 0.0
        %388 = vmatpush1.msra.mxu0 %v364
        %389 = vmatprep.subr.mxu0 0.0
        %390 = vmatpush1.msra.mxu0 %v365
        %391 = vmatprep.subr.mxu0 0.0
        %392 = vmatpush1.msra.mxu0 %v366
        %393 = vmatprep.subr.mxu0 0.0
        %394 = vmatpush1.msra.mxu0 %v367
        %395 = vmatprep.subr.mxu0 0.0
        %396 = vmatpush1.msra.mxu0 %v368
        %397 = vmatprep.subr.mxu0 0.0
        %398 = vmatpush1.msra.mxu0 %v369
        %399 = vmatprep.subr.mxu0 0.0
        %400 = vmatpush1.msra.mxu0 %v370
        %401 = vmatprep.subr.mxu0 0.0
        %402 = vmatpush1.msra.mxu0 %v371
        %403 = vmatprep.subr.mxu0 0.0
        %404 = vmatpush1.msra.mxu0 %v372
        %405 = vmatprep.subr.mxu0 0.0
        %406 = vmatpush1.msra.mxu0 0.0
        %407 = vmatprep.subr.mxu0 0.0
        %408 = vmatpush1.msra.mxu0 0.0
        %409 = vmatprep.subr.mxu0 0.0
        %410 = vmatpush1.msra.mxu0 0.0
        %411 = vmatprep.subr.mxu0 0.0
        %412 = vmatpush1.msra.mxu0 0.0
        %413 = vmatprep.subr.mxu0 0.0
        %414 = vmatpush1.msra.mxu0 0.0
        %415 = vmatprep.subr.mxu0 0.0
        %416 = vmatpush1.msra.mxu0 0.0
        %417 = vmatprep.subr.mxu0 0.0
        %418 = vmatpush1.msra.mxu0 0.0
        %419 = vmatprep.subr.mxu0 0.0
        %420 = vmatpush1.msra.mxu0 0.0
        %421 = vmatprep.subr.mxu0 0.0
        %422 = vmatpush1.msra.mxu0 0.0
        %423 = vmatprep.subr.mxu0 0.0
        %424 = vmatpush1.msra.mxu0 0.0
        %425 = vmatprep.subr.mxu0 0.0
        %426 = vmatpush1.msra.mxu0 0.0
        %427 = vmatprep.subr.mxu0 0.0
        %428 = vmatpush1.msra.mxu0 0.0
        %429 = vmatprep.subr.mxu0 0.0
        %430 = vmatpush1.msra.mxu0 0.0
        %431 = vmatprep.subr.mxu0 0.0
        %432 = vmatpush1.msra.mxu0 0.0
        %433 = vmatprep.subr.mxu0 0.0
        %434 = vmatpush1.msra.mxu0 0.0
        %435 = vmatprep.subr.mxu0 0.0
        %436 = vmatpush1.msra.mxu0 0.0
        %437 = vmatprep.mubr.f32.mxu0 0.0
        %438 = vmatmul.mubr.f32.gmra.mrb[0].mxu0 %v353
        %v439 = vpop.f32.mrb[0].mxu0
        %v440 = vadd.f32 0.0, %v439
        %v441 = vpop.f32.mrb[0].mxu0
        %442 = vdwg.mxu0
        %v443 = vadd.f32 %v354, %v440
        %444 = vst [vmem:[#allocation2] sm:$0xff] %v443
        %p445 = scmp.eq.s32.totalorder %s30, 1
        // Predicated region
        $region49: #{tpu_custom_call.1} parent=31 // pred_check
          %p446 = pneg %p445
        $region50: #{tpu_custom_call.1} parent=31 // pred_check_branch
          %448 = sbr.rel (%p446) target = $region52
        $region51: #{tpu_custom_call.1} parent=31 // pred_region
          %v449 = vld [vmem:[#allocation2] sm:$0xff]
          %450 = vst [vmem:[%s265] sm:$0xff] %v449
        $region52: #{tpu_custom_call.1} parent=31 // pred_fallthru
          _
        %s451 = sand.u32 %s134, 1
        %s452 = scalar_lea.sflag [#allocation6], %s451
        %s453 = sand.u32 %s134, 1
        %s454 = smul.addr %s453, 8
        %s455 = scalar_lea.vmem [#allocation9], %s454
        // Predicated region
        $region53: #{tpu_custom_call.1} parent=31 // pred_check
          %p456 = pneg %p144
        $region54: #{tpu_custom_call.1} parent=31 // pred_check_branch
          %458 = sbr.rel (%p456) target = $region56
        $region55: #{tpu_custom_call.1} parent=31 // pred_region
          %s460 = ssub.s32 128, 128
          %461 = vsyncadd %s452, %s460
          %s462 = smul.addr %s29, 2
          %s463 = sadd.s32 %s28, %s462
          %s464 = smul.addr %s463, 128
          %s465 = scalar_lea.hbm %s3, %s464
          %s467 = sshll.u32 %s455, 4
          %s468 = int_to_ptr.vmem [resolvable:$true] %s467
          %470 = dma.vmem_to_hbm [thread:$0]  %s468, 128, %s465, %s452
        $region56: #{tpu_custom_call.1} parent=31 // pred_fallthru
          _
      $region32: #{tpu_custom_call.1} parent=5 // pred_fallthru
        _
      %p471 = scmp.le.s32.totalorder 2, %s18
      // Predicated region
      $region57: #{tpu_custom_call.1} parent=5 // pred_check
        %p472 = pneg %p471
      $region58: #{tpu_custom_call.1} parent=5 // pred_check_branch
        %474 = sbr.rel (%p472) target = $region60
      $region59: #{tpu_custom_call.1} parent=5 // pred_region
        %s475 = ssub.s32 %s18, 2
        // Predicated region
        $region61: #{tpu_custom_call.1} parent=59 // pred_check
          %p476 = pneg %p150
        $region62: #{tpu_custom_call.1} parent=59 // pred_check_branch
          %478 = sbr.rel (%p476) target = $region64
        $region63: #{tpu_custom_call.1} parent=59 // pred_region
          %s479 = sand.u32 %s135, 1
          %s480 = scalar_lea.sflag [#allocation6], %s479
          %s481 = sand.u32 %s135, 1
          %s482 = smul.addr %s481, 8
          %s483 = scalar_lea.vmem [#allocation9], %s482
          %484 = dma.done %s480, 128
        $region64: #{tpu_custom_call.1} parent=59 // pred_fallthru
          _
      $region60: #{tpu_custom_call.1} parent=5 // pred_fallthru
        _
    $region6: #{tpu_custom_call.1} parent=1 // loop_footer
      %s22 = sadd.s32 1, %s18
    $region7: #{tpu_custom_call.1} parent=1 // loop_footer_branch
      %17 = sbr.rel target = $region3
    $region8: #{tpu_custom_call.1} parent=1 // loop_exit
      _
    %485 = vsyncpa [#allocation5], 1
    %s486 = scalar_lea.sflag [#allocation5], 1
    %487 = vsyncpa %s486, 1
    %488 = vsyncpa [#allocation8], 1
    %s489 = scalar_lea.sflag [#allocation8], 1
    %490 = vsyncpa %s489, 1
    %491 = vsyncpa [#allocation6], 1
    %s492 = scalar_lea.sflag [#allocation6], 1
    %493 = vsyncpa %s492, 1

</llo_original>
